<compile_context>
chip_gen: v7x
topology: tpu7x:2x2x1
jax: 0.10.0
libtpu: 0.0.40
codegen_flags: <defaults>
</compile_context>

<pallas_src>
import jax
import jax.numpy as jnp
from jax.experimental import pallas as pl
from jax.experimental.pallas import tpu as pltpu

HID = 8            # fc1 output features (fixed by the module)
OUT = 1            # fc2 output features (fixed by the module)
PARAM_LANES = 128  # packed parameter tile is one native (8, 128) f32 tile


def _make_critic_kernel(in_dim):
    """Kernel body specialized on the (static) input feature count."""
    B1_COL = in_dim          # lane column holding fc1 bias
    W2_COL = in_dim + 1      # lane column holding fc2 weight (as a column)
    B2_COL = in_dim + 2      # lane column holding fc2 bias (sublane 0)

    def kernel(x_ref, p_ref, o_ref):
        # x_ref : (in_dim, TB)  -- batch on lanes (lane-dense)
        # p_ref : (HID, 128)    -- packed params, constant block across grid
        # o_ref : (OUT, TB)
        tb = x_ref.shape[1]
        P = p_ref[...]
        xT = x_ref[...].astype(jnp.float32)

        # fc1 as `in_dim` broadcast-FMAs on the VPU (K=4 wastes the MXU).
        # h[hid, b] = b1[hid] + sum_k w1[hid, k] * x[b, k]
        h = jnp.zeros((HID, tb), jnp.float32) + P[:, B1_COL:B1_COL + 1]
        for k in range(in_dim):                      # static, fully unrolled
            h = h + P[:, k:k + 1] * xT[k:k + 1, :]
        h = jnp.maximum(h, 0.0)                      # ReLU

        # fc2: weight the HID=8 sublanes then reduce across sublanes (XLU).
        o = jnp.sum(h * P[:, W2_COL:W2_COL + 1], axis=0, keepdims=True)
        o = o + P[0:1, B2_COL:B2_COL + 1]
        o_ref[...] = o.astype(o_ref.dtype)

    return kernel


def pack_params(w1, b1, w2, b2):
    """Pack torch-layout params into a single (8, 128) f32 tile.

    w1: (HID, in_dim)  [== torch fc1.weight]
    b1: (HID,)         [== torch fc1.bias]
    w2: (OUT, HID)     [== torch fc2.weight]
    b2: (OUT,)         [== torch fc2.bias]
    """
    hid, in_dim = w1.shape
    assert hid == HID, f"fc1 must have {HID} output features"
    assert w2.shape == (OUT, HID) and b1.shape == (HID,) and b2.shape == (OUT,)
    assert in_dim + 3 <= PARAM_LANES, "in_dim too large for packed param tile"
    P = jnp.zeros((HID, PARAM_LANES), jnp.float32)
    P = P.at[:, :in_dim].set(w1.astype(jnp.float32))        # w1 columns
    P = P.at[:, in_dim].set(b1.astype(jnp.float32))         # b1 column
    P = P.at[:, in_dim + 1].set(w2[0, :].astype(jnp.float32))  # w2 as a column
    P = P.at[0, in_dim + 2].set(b2[0].astype(jnp.float32))     # b2 scalar
    return P


def critic_forward(x, w1, b1, w2, b2, *, block_b=512):
    """Fused Critic forward.

    x : (B, in_dim); weights in torch layout (see pack_params).
    Returns (B, 1), matching `fc2(relu(fc1(x)))`.
    """
    B, in_dim = x.shape
    params = pack_params(w1, b1, w2, b2)

    # Batch tile on the lane axis: multiple of 128 lanes.
    tb = max(128, (block_b // 128) * 128)
    b_pad = pl.cdiv(B, tb) * tb

    xT = x.T                                   # (in_dim, B): batch -> lanes
    if b_pad != B:
        xT = jnp.pad(xT, ((0, 0), (0, b_pad - B)))

    grid = (b_pad // tb,)
    outT = pl.pallas_call(
        _make_critic_kernel(in_dim),
        out_shape=jax.ShapeDtypeStruct((OUT, b_pad), x.dtype),
        grid=grid,
        in_specs=[
            pl.BlockSpec((in_dim, tb), lambda i: (0, i)),          # x^T tiles
            pl.BlockSpec((HID, PARAM_LANES), lambda i: (0, 0)),    # resident params
        ],
        out_specs=pl.BlockSpec((OUT, tb), lambda i: (0, i)),       # lane-dense out
        compiler_params=pltpu.CompilerParams(
            # Batch blocks are independent -> shardable across v7x's 2 TCs.
            dimension_semantics=("parallel",),
        ),
    )(xT, params)

    # (1, B) row-major has identical element order to (B, 1): pure reshape.
    return outT[:, :B].reshape(B, OUT)


def init_critic_params(key, in_dim, hid=HID, out_dim=OUT, dtype=jnp.float32):
    """Deterministic init mimicking torch.nn.Linear (U[-1/sqrt(fan_in), +])."""
    k1, k2, k3, k4 = jax.random.split(key, 4)
    bound1 = 1.0 / jnp.sqrt(in_dim)
    bound2 = 1.0 / jnp.sqrt(hid)
    w1 = jax.random.uniform(k1, (hid, in_dim), dtype, -bound1, bound1)
    b1 = jax.random.uniform(k2, (hid,), dtype, -bound1, bound1)
    w2 = jax.random.uniform(k3, (out_dim, hid), dtype, -bound2, bound2)
    b2 = jax.random.uniform(k4, (out_dim,), dtype, -bound2, bound2)
    return w1, b1, w2, b2


if __name__ == "__main__":
    key = jax.random.PRNGKey(0)
    kx, kp = jax.random.split(key)

    # CartPole-like observation: in_dim=4. Batch many env/timesteps into one
    # call so the tiled, pipelined path is exercised (grid of 4 steps).
    B, in_dim = 512, 4
    x = jax.random.normal(kx, (B, in_dim), dtype=jnp.float32)
    w1, b1, w2, b2 = init_critic_params(kp, in_dim)

    out = critic_forward(x, w1, b1, w2, b2, block_b=128)
    out = jax.block_until_ready(out)

    # Reference check in plain JAX (same semantics as the torch forward).
    ref = jnp.maximum(x @ w1.T + b1, 0.0) @ w2.T + b2
    assert out.shape == (B, OUT)
    assert jnp.allclose(out, ref, atol=1e-5, rtol=1e-5)

    print("KERNEL_OK")
</pallas_src>

<mosaic_0001>
module attributes {stable_mosaic.version = 11 : i64} {
  func.func @kernel(%arg0: i32, %arg1: memref<4x128xf32, #tpu.memory_space<vmem>>, %arg2: memref<8x128xf32, #tpu.memory_space<vmem>>, %arg3: memref<1x128xf32, #tpu.memory_space<vmem>>) attributes {dimension_semantics = [#tpu.dimension_semantics<parallel>], iteration_bounds = array<i64: 4>, scalar_prefetch = 0 : i64, scratch_operands = 0 : i64, tpu.core_type = #tpu.core_type<tc>, window_params = [{transform_indices = @transform_0, window_bounds = array<i64: 4, 128>}, {pipeline_mode = #tpu.pipeline_mode<synchronous>, transform_indices = @transform_1, window_bounds = array<i64: 8, 128>}, {transform_indices = @transform_2, window_bounds = array<i64: 1, 128>}]} {
    %c0 = arith.constant 0 : index
    %c0_0 = arith.constant 0 : index
    %0 = vector.load %arg2[%c0, %c0_0] : memref<8x128xf32, #tpu.memory_space<vmem>>, vector<8x128xf32>
    %c0_1 = arith.constant 0 : index
    %c0_2 = arith.constant 0 : index
    %1 = vector.load %arg1[%c0_1, %c0_2] : memref<4x128xf32, #tpu.memory_space<vmem>>, vector<4x128xf32>
    %cst = arith.constant 0.000000e+00 : f32
    %2 = vector.broadcast %cst : f32 to vector<8x128xf32>
    %3 = vector.extract_strided_slice %0 {offsets = [0, 4], sizes = [8, 1], strides = [1, 1]} : vector<8x128xf32> to vector<8x1xf32>
    %4 = vector.broadcast %3 : vector<8x1xf32> to vector<8x128xf32>
    %5 = arith.addf %2, %4 : vector<8x128xf32>
    %6 = vector.extract_strided_slice %0 {offsets = [0, 0], sizes = [8, 1], strides = [1, 1]} : vector<8x128xf32> to vector<8x1xf32>
    %7 = vector.extract_strided_slice %1 {offsets = [0, 0], sizes = [1, 128], strides = [1, 1]} : vector<4x128xf32> to vector<1x128xf32>
    %8 = vector.broadcast %6 : vector<8x1xf32> to vector<8x128xf32>
    %9 = vector.broadcast %7 : vector<1x128xf32> to vector<8x128xf32>
    %10 = arith.mulf %8, %9 : vector<8x128xf32>
    %11 = arith.addf %5, %10 : vector<8x128xf32>
    %12 = vector.extract_strided_slice %0 {offsets = [0, 1], sizes = [8, 1], strides = [1, 1]} : vector<8x128xf32> to vector<8x1xf32>
    %13 = vector.extract_strided_slice %1 {offsets = [1, 0], sizes = [1, 128], strides = [1, 1]} : vector<4x128xf32> to vector<1x128xf32>
    %14 = vector.broadcast %12 : vector<8x1xf32> to vector<8x128xf32>
    %15 = vector.broadcast %13 : vector<1x128xf32> to vector<8x128xf32>
    %16 = arith.mulf %14, %15 : vector<8x128xf32>
    %17 = arith.addf %11, %16 : vector<8x128xf32>
    %18 = vector.extract_strided_slice %0 {offsets = [0, 2], sizes = [8, 1], strides = [1, 1]} : vector<8x128xf32> to vector<8x1xf32>
    %19 = vector.extract_strided_slice %1 {offsets = [2, 0], sizes = [1, 128], strides = [1, 1]} : vector<4x128xf32> to vector<1x128xf32>
    %20 = vector.broadcast %18 : vector<8x1xf32> to vector<8x128xf32>
    %21 = vector.broadcast %19 : vector<1x128xf32> to vector<8x128xf32>
    %22 = arith.mulf %20, %21 : vector<8x128xf32>
    %23 = arith.addf %17, %22 : vector<8x128xf32>
    %24 = vector.extract_strided_slice %0 {offsets = [0, 3], sizes = [8, 1], strides = [1, 1]} : vector<8x128xf32> to vector<8x1xf32>
    %25 = vector.extract_strided_slice %1 {offsets = [3, 0], sizes = [1, 128], strides = [1, 1]} : vector<4x128xf32> to vector<1x128xf32>
    %26 = vector.broadcast %24 : vector<8x1xf32> to vector<8x128xf32>
    %27 = vector.broadcast %25 : vector<1x128xf32> to vector<8x128xf32>
    %28 = arith.mulf %26, %27 : vector<8x128xf32>
    %29 = arith.addf %23, %28 : vector<8x128xf32>
    %cst_3 = arith.constant 0.000000e+00 : f32
    %30 = vector.broadcast %cst_3 : f32 to vector<8x128xf32>
    %31 = arith.maximumf %29, %30 : vector<8x128xf32>
    %32 = vector.extract_strided_slice %0 {offsets = [0, 5], sizes = [8, 1], strides = [1, 1]} : vector<8x128xf32> to vector<8x1xf32>
    %33 = vector.broadcast %32 : vector<8x1xf32> to vector<8x128xf32>
    %34 = arith.mulf %31, %33 : vector<8x128xf32>
    %cst_4 = arith.constant dense<0.000000e+00> : vector<128xf32>
    %35 = vector.multi_reduction <add>, %34, %cst_4 [0] : vector<8x128xf32> to vector<128xf32>
    %36 = vector.shape_cast %35 : vector<128xf32> to vector<1x128xf32>
    %37 = vector.extract_strided_slice %0 {offsets = [0, 6], sizes = [1, 1], strides = [1, 1]} : vector<8x128xf32> to vector<1x1xf32>
    %38 = vector.broadcast %37 : vector<1x1xf32> to vector<1x128xf32>
    %39 = arith.addf %36, %38 : vector<1x128xf32>
    %c0_5 = arith.constant 0 : index
    %c0_6 = arith.constant 0 : index
    %40 = vector.load %arg3[%c0_5, %c0_6] : memref<1x128xf32, #tpu.memory_space<vmem>>, vector<1x128xf32>
    tpu.vector_store %arg3[%c0_5, %c0_6], %39 {strides = array<i32>} : memref<1x128xf32, #tpu.memory_space<vmem>>, vector<1x128xf32>,
    return
  }
  func.func @transform_0(%arg0: i32) -> (i32, i32) {
    %c0_i32 = arith.constant 0 : i32
    %c0_i32_0 = arith.constant 0 : i32
    return %c0_i32, %arg0 : i32, i32
  }
  func.func @transform_1(%arg0: i32) -> (i32, i32) {
    %c0_i32 = arith.constant 0 : i32
    %c0_i32_0 = arith.constant 0 : i32
    %c0_i32_1 = arith.constant 0 : i32
    return %c0_i32, %c0_i32_0 : i32, i32
  }
  func.func @transform_2(%arg0: i32) -> (i32, i32) {
    %c0_i32 = arith.constant 0 : i32
    %c0_i32_0 = arith.constant 0 : i32
    return %c0_i32, %arg0 : i32, i32
  }
}

</mosaic_0001>

<llo_original>
// kernel: tpu_custom_call.1
$region0: #{tpu_custom_call.1}
  #allocation0 [shape = 'u32[]', space=smem, size = 0x4, offset = 0x4, fixed_abs, tag = 'smem constant byte address 0x4 - core index']
  #allocation1 [shape = 'u32[144,128]{1,0:T(1,128)}', space=vmem, size = 0x12000, scoped, tag = 'internal scratch']
  %s0 = inlined_call_operand.hbm [shape: f32[4,512], index: 0, kind: input, shape index: {}]
  %s1 = inlined_call_operand.hbm [shape: f32[8,128], index: 1, kind: input, shape index: {}]
  %s2 = inlined_call_operand.hbm [shape: f32[1,512], index: 2, kind: output, shape index: {}]
  %s3 = sld [smem:[#allocation0]]
  $region49: #{tpu_custom_call.1} parent=0
    _
  %s5 = ssub.s32 1, %s3
  %s6 = scalar_select 0, %s5, %s3
  $region1: #{tpu_custom_call.1} parent=0
    #allocation2 [shape = 'u8[4096]{0}', space=vmem, size = 0x1000, scoped, tag = 'input window, operand 0']
    #allocation3 [shape = 's32[2]{0}', space=sflag, size = 0x8, scoped, tag = 'scoped memory for tpu_custom_call.1']
    #allocation4 [shape = 's32[2]{0}', space=sflag, size = 0x8, scoped, tag = 'scoped memory for tpu_custom_call.1']
    #allocation5 [shape = 'u8[4096]{0}', space=vmem, size = 0x1000, scoped, tag = 'input window, operand 1, single buffered']
    #allocation6 [shape = 's32[1]{0}', space=sflag, size = 0x4, scoped, tag = 'scoped memory for tpu_custom_call.1']
    #allocation7 [shape = 'u8[1024]{0}', space=vmem, size = 0x400, scoped, tag = 'output window, operand 0']
    %7 = vsyncpa [#allocation3], 0
    %s8 = scalar_lea.sflag [#allocation3], 1
    %9 = vsyncpa %s8, 0
    %10 = vsyncpa [#allocation6], 0
    %11 = vsyncpa [#allocation4], 0
    %s12 = scalar_lea.sflag [#allocation4], 1
    %13 = vsyncpa %s12, 0
    loop: start=0, step=1, limit=6
    $region2: #{tpu_custom_call.1} parent=1 // loop_pre_header
      _
    $region3: #{tpu_custom_call.1} parent=1 // loop_header
      %s15 = sphi 0, %s19
      %p16 = scmp.ge.s32.totalorder %s15, 6
      %s25 = sphi 0, %s27
      %s28 = sphi 0, %s25
      %s29 = sphi 0, %s28
      %s45 = sphi 0, %s29
      %s49 = sphi 0, %s49
      %s51 = sphi 0, %s49
      %s52 = sphi 0, %s51
      %s66 = sphi 0, %s52
      %s72 = sphi 0, %s74
      %s75 = sphi 0, %s72
      %s76 = sphi 0, %s75
      %s92 = sphi 0, %s76
    $region4: #{tpu_custom_call.1} parent=1 // loop_header_branch
      %18 = sbr.rel (%p16) target = $region8
    $region5: #{tpu_custom_call.1} parent=1 // loop_body
      %s20 = ssub.s32 %s15, 1
      %s21 = ssub.s32 %s15, 2
      %s22 = sadd.s32 %s15, 1
      %s23 = ssub.s32 %s15, %s22
      %p24 = scmp.eq.s32.totalorder %s23, 0
      %s26 = sadd.s32 %s25, 1
      %s27 = scalar_select %p24, %s25, %s26
      %p30 = pneg %p24
      %p31 = scmp.eq.s32.totalorder %s15, 3
      %p32 = por %p30, %p31
      %p33 = scmp.ne.s32.totalorder %s25, %s28
      %p34 = scmp.eq.s32.totalorder %s15, 0
      %p35 = por %p33, %p34
      %p36 = scmp.ne.s32.totalorder %s25, %s28
      %p37 = scmp.eq.s32.totalorder %s20, 3
      %p38 = por %p36, %p37
      %p39 = scmp.ne.s32.totalorder %s28, %s29
      %p40 = scmp.eq.s32.totalorder %s20, 0
      %p41 = por %p39, %p40
      %p42 = scmp.ne.s32.totalorder %s28, %s29
      %p43 = scmp.eq.s32.totalorder %s21, 3
      %p44 = por %p42, %p43
      %p46 = scmp.ne.s32.totalorder %s29, %s45
      %p47 = scmp.eq.s32.totalorder %s21, 0
      %p48 = por %p46, %p47
      %s50 = sadd.s32 %s49, 1
      %p53 = scmp.eq.s32.totalorder %s15, 3
      %p54 = scmp.ne.s32.totalorder %s49, %s51
      %p55 = scmp.eq.s32.totalorder %s15, 0
      %p56 = por %p54, %p55
      %p57 = scmp.ne.s32.totalorder %s49, %s51
      %p58 = scmp.eq.s32.totalorder %s20, 3
      %p59 = por %p57, %p58
      %p60 = scmp.ne.s32.totalorder %s51, %s52
      %p61 = scmp.eq.s32.totalorder %s20, 0
      %p62 = por %p60, %p61
      %p63 = scmp.ne.s32.totalorder %s51, %s52
      %p64 = scmp.eq.s32.totalorder %s21, 3
      %p65 = por %p63, %p64
      %p67 = scmp.ne.s32.totalorder %s52, %s66
      %p68 = scmp.eq.s32.totalorder %s21, 0
      %p69 = por %p67, %p68
      %s70 = ssub.s32 %s15, %s22
      %p71 = scmp.eq.s32.totalorder %s70, 0
      %s73 = sadd.s32 %s72, 1
      %s74 = scalar_select %p71, %s72, %s73
      %p77 = pneg %p71
      %p78 = scmp.eq.s32.totalorder %s15, 3
      %p79 = por %p77, %p78
      %p80 = scmp.ne.s32.totalorder %s72, %s75
      %p81 = scmp.eq.s32.totalorder %s15, 0
      %p82 = por %p80, %p81
      %p83 = scmp.ne.s32.totalorder %s72, %s75
      %p84 = scmp.eq.s32.totalorder %s20, 3
      %p85 = por %p83, %p84
      %p86 = scmp.ne.s32.totalorder %s75, %s76
      %p87 = scmp.eq.s32.totalorder %s20, 0
      %p88 = por %p86, %p87
      %p89 = scmp.ne.s32.totalorder %s75, %s76
      %p90 = scmp.eq.s32.totalorder %s21, 3
      %p91 = por %p89, %p90
      %p93 = scmp.ne.s32.totalorder %s76, %s92
      %p94 = scmp.eq.s32.totalorder %s21, 0
      %p95 = por %p93, %p94
      %p96 = scmp.le.s32.totalorder 1, %s15
      %p97 = scmp.lt.s32.totalorder %s15, 5
      %p98 = pnand %p96, %p97
      %p99 = pneg %p98
      // Predicated region
      $region9: #{tpu_custom_call.1} parent=5 // pred_check
        _
      $region10: #{tpu_custom_call.1} parent=5 // pred_check_branch
        %101 = sbr.rel (%p98) target = $region12
      $region11: #{tpu_custom_call.1} parent=5 // pred_region
        %s102 = ssub.s32 %s15, 1
        // Predicated region
        $region13: #{tpu_custom_call.1} parent=11 // pred_check
          %p103 = pneg %p62
        $region14: #{tpu_custom_call.1} parent=11 // pred_check_branch
          %105 = sbr.rel (%p103) target = $region16
        $region15: #{tpu_custom_call.1} parent=11 // pred_region
          %s107 = ssub.s32 128, 128
          %108 = vsyncadd [#allocation6], %s107
          %s110 = sshll.u32 [#allocation5], 4
          %s111 = int_to_ptr.vmem [resolvable:$true] %s110
          %113 = dma.hbm_to_vmem [thread:$0]  %s1, 128, %s111, [#allocation6]
        $region16: #{tpu_custom_call.1} parent=11 // pred_fallthru
          _
      $region12: #{tpu_custom_call.1} parent=5 // pred_fallthru
        _
      %p114 = scmp.lt.s32.totalorder %s15, 4
      // Predicated region
      $region17: #{tpu_custom_call.1} parent=5 // pred_check
        %p115 = pneg %p114
      $region18: #{tpu_custom_call.1} parent=5 // pred_check_branch
        %117 = sbr.rel (%p115) target = $region20
      $region19: #{tpu_custom_call.1} parent=5 // pred_region
        // Predicated region
        $region21: #{tpu_custom_call.1} parent=19 // pred_check
          %p118 = pneg %p35
        $region22: #{tpu_custom_call.1} parent=19 // pred_check_branch
          %120 = sbr.rel (%p118) target = $region24
        $region23: #{tpu_custom_call.1} parent=19 // pred_region
          %s121 = sand.u32 %s25, 1
          %s122 = scalar_lea.sflag [#allocation3], %s121
          %s123 = sand.u32 %s25, 1
          %s124 = smul.addr %s123, 4
          %s125 = scalar_lea.vmem [#allocation2], %s124
          %s127 = ssub.s32 64, 64
          %128 = vsyncadd %s122, %s127
          %s129 = smul.addr %s15, 64
          %s130 = scalar_lea.hbm %s0, %s129
          %s132 = sshll.u32 %s125, 4
          %s133 = int_to_ptr.vmem [resolvable:$true] %s132
          %135 = dma.hbm_to_vmem [thread:$0]  %s130, 64, %s133, %s122
        $region24: #{tpu_custom_call.1} parent=19 // pred_fallthru
          _
      $region20: #{tpu_custom_call.1} parent=5 // pred_fallthru
        _
      %p136 = scmp.le.s32.totalorder 1, %s15
      %p137 = scmp.lt.s32.totalorder %s15, 5
      %p138 = pnand %p136, %p137
      %p139 = pneg %p138
      // Predicated region
      $region25: #{tpu_custom_call.1} parent=5 // pred_check
        _
      $region26: #{tpu_custom_call.1} parent=5 // pred_check_branch
        %141 = sbr.rel (%p138) target = $region28
      $region27: #{tpu_custom_call.1} parent=5 // pred_region
        %s142 = ssub.s32 %s15, 1
        %s143 = sand.u32 %s28, 1
        %s144 = scalar_lea.sflag [#allocation3], %s143
        %s145 = sand.u32 %s28, 1
        %s146 = smul.addr %s145, 4
        %s147 = scalar_lea.vmem [#allocation2], %s146
        // Predicated region
        $region29: #{tpu_custom_call.1} parent=27 // pred_check
          %p148 = pneg %p41
        $region30: #{tpu_custom_call.1} parent=27 // pred_check_branch
          %150 = sbr.rel (%p148) target = $region32
        $region31: #{tpu_custom_call.1} parent=27 // pred_region
          %151 = dma.done %s144, 64
        $region32: #{tpu_custom_call.1} parent=27 // pred_fallthru
          _
        // Predicated region
        $region33: #{tpu_custom_call.1} parent=27 // pred_check
          %p152 = pneg %p62
        $region34: #{tpu_custom_call.1} parent=27 // pred_check_branch
          %154 = sbr.rel (%p152) target = $region36
        $region35: #{tpu_custom_call.1} parent=27 // pred_region
          %155 = dma.done [#allocation6], 128
        $region36: #{tpu_custom_call.1} parent=27 // pred_fallthru
          _
        %s156 = sand.u32 %s28, 1
        %s157 = scalar_lea.sflag [#allocation3], %s156
        %s158 = sand.u32 %s28, 1
        %s159 = smul.addr %s158, 4
        %s160 = scalar_lea.vmem [#allocation2], %s159
        %p161 = pneg %p41
        %p162 = pneg %p38
        %p163 = pneg %p62
        %p164 = pneg %p59
        %p165 = pneg %p88
        %p166 = pneg %p85
        %s167 = sand.u32 %s75, 1
        %s168 = scalar_lea.sflag [#allocation4], %s167
        %s169 = sand.u32 %s75, 1
        %s170 = scalar_lea.vmem [#allocation7], %s169
        %v171 = vld [vmem:[#allocation5] sm:$0xff]
        %v172 = vld [vmem:[%s147] sm:$0xf]
        %174 = vset.pattern.permute.xlu0 4
        %175 = vperm.xlu0 %174, %v171
        %v176 = vpop.permute.xlu0 %175
        %v178 = vadd.f32 %v176, 0.0
        %179 = vset.pattern.permute.xlu0 0
        %180 = vperm.xlu0 %179, %v171
        %v181 = vpop.permute.xlu0 %180
        %v183 = vlaneseq
        %v184 = vshrl.u32 %v183, 7
        %v185 = vsub.s32 0, %v184
        %v186 = vrot.slane %v172, %v185
        %v187 = vmul.f32 %v181, %v186
        %v188 = vadd.f32 %v178, %v187
        %189 = vset.pattern.permute.xlu0 1
        %190 = vperm.xlu0 %189, %v171
        %v191 = vpop.permute.xlu0 %190
        %v193 = vlaneseq
        %v194 = vshrl.u32 %v193, 7
        %v195 = vsub.s32 1, %v194
        %v196 = vrot.slane %v172, %v195
        %v197 = vmul.f32 %v191, %v196
        %v198 = vadd.f32 %v188, %v197
        %199 = vset.pattern.permute.xlu0 2
        %200 = vperm.xlu0 %199, %v171
        %v201 = vpop.permute.xlu0 %200
        %v203 = vlaneseq
        %v204 = vshrl.u32 %v203, 7
        %v205 = vsub.s32 2, %v204
        %v206 = vrot.slane %v172, %v205
        %v207 = vmul.f32 %v201, %v206
        %v208 = vadd.f32 %v198, %v207
        %209 = vset.pattern.permute.xlu0 3
        %210 = vperm.xlu0 %209, %v171
        %v211 = vpop.permute.xlu0 %210
        %v213 = vlaneseq
        %v214 = vshrl.u32 %v213, 7
        %v215 = vsub.s32 3, %v214
        %v216 = vrot.slane %v172, %v215
        %v217 = vmul.f32 %v211, %v216
        %v218 = vadd.f32 %v208, %v217
        %v219 = vmax.f32 %v218, 0.0
        %220 = vset.pattern.permute.xlu0 5
        %221 = vperm.xlu0 %220, %v171
        %v222 = vpop.permute.xlu0 %221
        %v224 = vmul.f32 %v219, %v222
        %v225 = vrot.slane %v224, 4
        %v226 = vadd.f32 %v224, %v225
        %v227 = vrot.slane %v226, 2
        %v228 = vadd.f32 %v226, %v227
        %v229 = vrot.slane %v228, 1
        %v230 = vadd.f32 %v228, %v229
        %231 = vset.pattern.permute.xlu0 6
        %232 = vperm.xlu0 %231, %v171
        %v233 = vpop.permute.xlu0 %232
        %v235 = vadd.f32 %v230, %v233
        %236 = vst [vmem:[%s170] sm:$0x1] %v235
        %s237 = sand.u32 %s75, 1
        %s238 = scalar_lea.sflag [#allocation4], %s237
        %s239 = sand.u32 %s75, 1
        %s240 = scalar_lea.vmem [#allocation7], %s239
        // Predicated region
        $region37: #{tpu_custom_call.1} parent=27 // pred_check
          %p241 = pneg %p85
        $region38: #{tpu_custom_call.1} parent=27 // pred_check_branch
          %243 = sbr.rel (%p241) target = $region40
        $region39: #{tpu_custom_call.1} parent=27 // pred_region
          %s245 = ssub.s32 16, 16
          %246 = vsyncadd %s238, %s245
          %s247 = smul.addr %s20, 16
          %s248 = scalar_lea.hbm %s2, %s247
          %s250 = sshll.u32 %s240, 4
          %s251 = int_to_ptr.vmem [resolvable:$true] %s250
          %253 = dma.vmem_to_hbm [thread:$0]  %s251, 16, %s248, %s238
        $region40: #{tpu_custom_call.1} parent=27 // pred_fallthru
          _
      $region28: #{tpu_custom_call.1} parent=5 // pred_fallthru
        _
      %p254 = scmp.le.s32.totalorder 2, %s15
      // Predicated region
      $region41: #{tpu_custom_call.1} parent=5 // pred_check
        %p255 = pneg %p254
      $region42: #{tpu_custom_call.1} parent=5 // pred_check_branch
        %257 = sbr.rel (%p255) target = $region44
      $region43: #{tpu_custom_call.1} parent=5 // pred_region
        %s258 = ssub.s32 %s15, 2
        // Predicated region
        $region45: #{tpu_custom_call.1} parent=43 // pred_check
          %p259 = pneg %p91
        $region46: #{tpu_custom_call.1} parent=43 // pred_check_branch
          %261 = sbr.rel (%p259) target = $region48
        $region47: #{tpu_custom_call.1} parent=43 // pred_region
          %s262 = sand.u32 %s76, 1
          %s263 = scalar_lea.sflag [#allocation4], %s262
          %s264 = sand.u32 %s76, 1
          %s265 = scalar_lea.vmem [#allocation7], %s264
          %266 = dma.done %s263, 16
        $region48: #{tpu_custom_call.1} parent=43 // pred_fallthru
          _
      $region44: #{tpu_custom_call.1} parent=5 // pred_fallthru
        _
    $region6: #{tpu_custom_call.1} parent=1 // loop_footer
      %s19 = sadd.s32 1, %s15
    $region7: #{tpu_custom_call.1} parent=1 // loop_footer_branch
      %14 = sbr.rel target = $region3
    $region8: #{tpu_custom_call.1} parent=1 // loop_exit
      _
    %267 = vsyncpa [#allocation3], 1
    %s268 = scalar_lea.sflag [#allocation3], 1
    %269 = vsyncpa %s268, 1
    %270 = vsyncpa [#allocation6], 1
    %271 = vsyncpa [#allocation4], 1
    %s272 = scalar_lea.sflag [#allocation4], 1
    %273 = vsyncpa %s272, 1

</llo_original>
